<compile_context>
chip_gen: v6e
topology: v6e:2x2x1
jax: 0.10.0
libtpu: 0.0.40
codegen_flags: <defaults>
</compile_context>

<pallas_src>
import functools

import jax
import jax.numpy as jnp
from jax.experimental import pallas as pl
from jax.experimental.pallas import tpu as pltpu

_LANE = 128
_SUB = 8
_MAX_BLOCK_ROWS = 1024  # 1024 x 128 f32 = 512 KiB per input per pipeline buffer


def _bce_dice_kernel(x_ref, t_ref, out_ref, *, n_blocks, n_per_core):
    """Accumulates per-lane partials [sum(p*t), sum(p), sum(t), sum(bce)] into (4,128)."""
    c = pl.program_id(0)  # core-parallel axis (2)
    i = pl.program_id(1)  # sequential row-tile axis

    @pl.when(i == 0)
    def _init():
        out_ref[...] = jnp.zeros_like(out_ref)

    # Core c owns row-tiles [c*n_per_core, (c+1)*n_per_core). The index_map clamps any
    # overshoot tile back in-bounds (well-defined DMA); this guard skips its compute so
    # the duplicate tile contributes nothing.
    @pl.when(c * n_per_core + i < n_blocks)
    def _accumulate():
        x = x_ref[...].astype(jnp.float32)
        t = t_ref[...].astype(jnp.float32)

        # Share a single exp(-|x|) between sigmoid and the stable softplus term.
        e = jnp.exp(-jnp.abs(x))
        denom = 1.0 + e
        p = jnp.where(x >= 0.0, 1.0, e) / denom                      # sigmoid(x)
        # Numerically-stable BCE-with-logits (matches torch.nn.BCEWithLogitsLoss):
        #   max(x, 0) - x*t + log(1 + exp(-|x|))
        bce = jnp.maximum(x, 0.0) - x * t + jnp.log1p(e)

        # Keep accumulation vectorized (per-lane); cross-lane reduce happens in JAX.
        out_ref[0:1, :] += jnp.sum(p * t, axis=0, keepdims=True)
        out_ref[1:2, :] += jnp.sum(p, axis=0, keepdims=True)
        out_ref[2:3, :] += jnp.sum(t, axis=0, keepdims=True)
        out_ref[3:4, :] += jnp.sum(bce, axis=0, keepdims=True)


def _partial_sums_pallas(x2, t2, block_rows, n_blocks):
    """Run the fused reduction over the first n_blocks full (block_rows, 128) tiles."""
    n_per_core = pl.cdiv(n_blocks, 2)

    def in_map(c, i):
        b = jnp.minimum(c * n_per_core + i, n_blocks - 1)  # keep every DMA in-bounds
        return (b, 0)

    partials = pl.pallas_call(
        functools.partial(_bce_dice_kernel, n_blocks=n_blocks, n_per_core=n_per_core),
        out_shape=jax.ShapeDtypeStruct((2, 4, _LANE), jnp.float32),
        grid=(2, n_per_core),
        in_specs=[
            pl.BlockSpec((block_rows, _LANE), in_map),
            pl.BlockSpec((block_rows, _LANE), in_map),
        ],
        out_specs=pl.BlockSpec((None, 4, _LANE), lambda c, i: (c, 0, 0)),
        compiler_params=pltpu.CompilerParams(
            dimension_semantics=("parallel", "arbitrary")
        ),
    )(x2, t2)
    # -> (4,) == [sum(p*t), sum(p), sum(t), sum(bce)]
    return jnp.sum(partials, axis=(0, 2))


def _stable_sums_jax(x, t):
    """Pure-JAX partial sums for small tail slices (same math as the kernel)."""
    x = x.astype(jnp.float32)
    t = t.astype(jnp.float32)
    e = jnp.exp(-jnp.abs(x))
    p = jnp.where(x >= 0.0, 1.0, e) / (1.0 + e)
    bce = jnp.maximum(x, 0.0) - x * t + jnp.log1p(e)
    return jnp.stack([jnp.sum(p * t), jnp.sum(p), jnp.sum(t), jnp.sum(bce)])


def bce_dice_loss(logits, targets, eps=1e-9):
    assert logits.shape == targets.shape
    total = logits.size

    x = logits.reshape(-1)   # free reshape, keep original dtype (cast in-kernel)
    t = targets.reshape(-1)

    rows = total // _LANE
    if rows >= _SUB:
        block_rows = min(_MAX_BLOCK_ROWS, (rows // _SUB) * _SUB)
        n_blocks = rows // block_rows            # number of FULL tiles
    else:
        block_rows, n_blocks = 0, 0
    main = n_blocks * block_rows * _LANE

    sums = jnp.zeros((4,), jnp.float32)
    if n_blocks > 0:
        if total % _LANE == 0:
            # Free reshape; the grid only touches the first n_blocks*block_rows rows.
            x2 = x.reshape(rows, _LANE)
            t2 = t.reshape(rows, _LANE)
        else:
            # Rare path (element count not a multiple of 128): slice off the sub-row
            # remainder so the 2-D reshape is valid.
            # TODO(synk): could avoid this slice copy with a 1-D tail block if needed.
            x2 = x[: rows * _LANE].reshape(rows, _LANE)
            t2 = t[: rows * _LANE].reshape(rows, _LANE)
        sums = sums + _partial_sums_pallas(x2, t2, block_rows, n_blocks)

    if main < total:
        # Small remainder (< one row tile): reduce in plain JAX rather than padding
        # (and therefore copying) the whole input.
        sums = sums + _stable_sums_jax(x[main:], t[main:])

    s_pt, s_p, s_t, s_bce = sums[0], sums[1], sums[2], sums[3]
    # DiceLoss: 1 - (2*sum(p*t) + eps) / (sum(p) + sum(t))   [eps only in numerator,
    # exactly as in the reference PyTorch module]
    dice_loss = 1.0 - (2.0 * s_pt + eps) / (s_p + s_t)
    # BCEWithLogitsLoss: mean over all elements
    bce_loss = s_bce / total
    return bce_loss + dice_loss


def _reference_bce_dice(logits, targets, eps=1e-9):
    x = logits.astype(jnp.float32)
    t = targets.astype(jnp.float32)
    p = jax.nn.sigmoid(x)
    intersection = 2.0 * jnp.sum(p * t)
    union = jnp.sum(p) + jnp.sum(t)
    dice_loss = 1.0 - (intersection + eps) / union
    bce = jnp.maximum(x, 0.0) - x * t + jnp.log1p(jnp.exp(-jnp.abs(x)))
    return jnp.mean(bce) + dice_loss


if __name__ == "__main__":
    key = jax.random.PRNGKey(0)
    k1, k2 = jax.random.split(key)
    # NCHW, as the PyTorch module would see (e.g. segmentation logits/masks).
    logits = jax.random.normal(k1, (2, 4, 16, 16), dtype=jnp.float32)
    targets = (jax.random.uniform(k2, (2, 4, 16, 16)) > 0.5).astype(jnp.float32)

    loss = jax.block_until_ready(bce_dice_loss(logits, targets))
    ref = jax.block_until_ready(_reference_bce_dice(logits, targets))

    assert jnp.allclose(loss, ref, rtol=1e-5, atol=1e-5), (loss, ref)
    print("KERNEL_OK")
</pallas_src>

<mosaic_0001>
module attributes {stable_mosaic.version = 11 : i64} {
  func.func @_bce_dice_kernel(%arg0: i32, %arg1: i32, %arg2: memref<16x128xf32, #tpu.memory_space<vmem>>, %arg3: memref<16x128xf32, #tpu.memory_space<vmem>>, %arg4: memref<1x4x128xf32, #tpu.memory_space<vmem>>) attributes {dimension_semantics = [#tpu.dimension_semantics<parallel>, #tpu.dimension_semantics<arbitrary>], iteration_bounds = array<i64: 2, 1>, scalar_prefetch = 0 : i64, scratch_operands = 0 : i64, tpu.core_type = #tpu.core_type<tc>, window_params = [{transform_indices = @transform_0, window_bounds = array<i64: 16, 128>}, {transform_indices = @transform_1, window_bounds = array<i64: 16, 128>}, {transform_indices = @transform_2, window_bounds = array<i64: 1, 4, 128>}]} {
    %c0_i32 = arith.constant 0 : i32
    %0 = arith.cmpi eq, %arg1, %c0_i32 : i32
    %1 = arith.extui %0 : i1 to i32
    %c0_i32_0 = arith.constant 0 : i32
    %2 = arith.cmpi ne, %1, %c0_i32_0 : i32
    scf.if %2 {
      %cst = arith.constant 0.000000e+00 : f32
      %8 = vector.broadcast %cst : f32 to vector<4x128xf32>
      %c0 = arith.constant 0 : index
      %c0_3 = arith.constant 0 : index
      %c0_4 = arith.constant 0 : index
      %9 = vector.load %arg4[%c0, %c0_3, %c0_4] : memref<1x4x128xf32, #tpu.memory_space<vmem>>, vector<1x4x128xf32>
      %10 = vector.shape_cast %9 : vector<1x4x128xf32> to vector<4x128xf32>
      %11 = vector.shape_cast %8 : vector<4x128xf32> to vector<1x4x128xf32>
      tpu.vector_store %arg4[%c0, %c0_3, %c0_4], %11 {strides = array<i32>} : memref<1x4x128xf32, #tpu.memory_space<vmem>>, vector<1x4x128xf32>,
    } else {
    }
    %c1_i32 = arith.constant 1 : i32
    %3 = arith.muli %arg0, %c1_i32 : i32
    %4 = arith.addi %3, %arg1 : i32
    %c1_i32_1 = arith.constant 1 : i32
    %5 = arith.cmpi slt, %4, %c1_i32_1 : i32
    %6 = arith.extui %5 : i1 to i32
    %c0_i32_2 = arith.constant 0 : i32
    %7 = arith.cmpi ne, %6, %c0_i32_2 : i32
    scf.if %7 {
      %c0 = arith.constant 0 : index
      %c0_3 = arith.constant 0 : index
      %8 = vector.load %arg2[%c0, %c0_3] : memref<16x128xf32, #tpu.memory_space<vmem>>, vector<16x128xf32>
      %c0_4 = arith.constant 0 : index
      %c0_5 = arith.constant 0 : index
      %9 = vector.load %arg3[%c0_4, %c0_5] : memref<16x128xf32, #tpu.memory_space<vmem>>, vector<16x128xf32>
      %10 = math.absf %8 : vector<16x128xf32>
      %cst = arith.constant 0.000000e+00 : f32
      %11 = vector.broadcast %cst : f32 to vector<16x128xf32>
      %12 = arith.subf %11, %10 : vector<16x128xf32>
      %13 = math.exp %12 : vector<16x128xf32>
      %cst_6 = arith.constant 1.000000e+00 : f32
      %14 = vector.broadcast %cst_6 : f32 to vector<16x128xf32>
      %15 = arith.addf %14, %13 : vector<16x128xf32>
      %cst_7 = arith.constant 0.000000e+00 : f32
      %16 = vector.broadcast %cst_7 : f32 to vector<16x128xf32>
      %17 = arith.cmpf oge, %8, %16 : vector<16x128xf32>
      %cst_8 = arith.constant 1.000000e+00 : f32
      %18 = vector.broadcast %cst_8 : f32 to vector<16x128xf32>
      %19 = arith.select %17, %18, %13 : vector<16x128xi1>, vector<16x128xf32>
      %20 = arith.divf %19, %15 : vector<16x128xf32>
      %cst_9 = arith.constant 0.000000e+00 : f32
      %21 = vector.broadcast %cst_9 : f32 to vector<16x128xf32>
      %22 = arith.maximumf %8, %21 : vector<16x128xf32>
      %23 = arith.mulf %8, %9 : vector<16x128xf32>
      %24 = arith.subf %22, %23 : vector<16x128xf32>
      %25 = math.log1p %13 : vector<16x128xf32>
      %26 = arith.addf %24, %25 : vector<16x128xf32>
      %c0_10 = arith.constant 0 : index
      %c0_11 = arith.constant 0 : index
      %c0_12 = arith.constant 0 : index
      %27 = vector.load %arg4[%c0_10, %c0_11, %c0_12] : memref<1x4x128xf32, #tpu.memory_space<vmem>>, vector<1x1x128xf32>
      %28 = vector.shape_cast %27 : vector<1x1x128xf32> to vector<1x128xf32>
      %29 = arith.mulf %20, %9 : vector<16x128xf32>
      %cst_13 = arith.constant dense<0.000000e+00> : vector<128xf32>
      %30 = vector.multi_reduction <add>, %29, %cst_13 [0] : vector<16x128xf32> to vector<128xf32>
      %31 = vector.shape_cast %30 : vector<128xf32> to vector<1x128xf32>
      %32 = arith.addf %28, %31 : vector<1x128xf32>
      %c0_14 = arith.constant 0 : index
      %c0_15 = arith.constant 0 : index
      %c0_16 = arith.constant 0 : index
      %33 = vector.load %arg4[%c0_14, %c0_15, %c0_16] : memref<1x4x128xf32, #tpu.memory_space<vmem>>, vector<1x1x128xf32>
      %34 = vector.shape_cast %33 : vector<1x1x128xf32> to vector<1x128xf32>
      %35 = vector.shape_cast %32 : vector<1x128xf32> to vector<1x1x128xf32>
      tpu.vector_store %arg4[%c0_14, %c0_15, %c0_16], %35 {strides = array<i32>} : memref<1x4x128xf32, #tpu.memory_space<vmem>>, vector<1x1x128xf32>,
      %c0_17 = arith.constant 0 : index
      %c1 = arith.constant 1 : index
      %c0_18 = arith.constant 0 : index
      %36 = vector.load %arg4[%c0_17, %c1, %c0_18] : memref<1x4x128xf32, #tpu.memory_space<vmem>>, vector<1x1x128xf32>
      %37 = vector.shape_cast %36 : vector<1x1x128xf32> to vector<1x128xf32>
      %cst_19 = arith.constant dense<0.000000e+00> : vector<128xf32>
      %38 = vector.multi_reduction <add>, %20, %cst_19 [0] : vector<16x128xf32> to vector<128xf32>
      %39 = vector.shape_cast %38 : vector<128xf32> to vector<1x128xf32>
      %40 = arith.addf %37, %39 : vector<1x128xf32>
      %c0_20 = arith.constant 0 : index
      %c1_21 = arith.constant 1 : index
      %c0_22 = arith.constant 0 : index
      %41 = vector.load %arg4[%c0_20, %c1_21, %c0_22] : memref<1x4x128xf32, #tpu.memory_space<vmem>>, vector<1x1x128xf32>
      %42 = vector.shape_cast %41 : vector<1x1x128xf32> to vector<1x128xf32>
      %43 = vector.shape_cast %40 : vector<1x128xf32> to vector<1x1x128xf32>
      tpu.vector_store %arg4[%c0_20, %c1_21, %c0_22], %43 {strides = array<i32>} : memref<1x4x128xf32, #tpu.memory_space<vmem>>, vector<1x1x128xf32>,
      %c0_23 = arith.constant 0 : index
      %c2 = arith.constant 2 : index
      %c0_24 = arith.constant 0 : index
      %44 = vector.load %arg4[%c0_23, %c2, %c0_24] : memref<1x4x128xf32, #tpu.memory_space<vmem>>, vector<1x1x128xf32>
      %45 = vector.shape_cast %44 : vector<1x1x128xf32> to vector<1x128xf32>
      %cst_25 = arith.constant dense<0.000000e+00> : vector<128xf32>
      %46 = vector.multi_reduction <add>, %9, %cst_25 [0] : vector<16x128xf32> to vector<128xf32>
      %47 = vector.shape_cast %46 : vector<128xf32> to vector<1x128xf32>
      %48 = arith.addf %45, %47 : vector<1x128xf32>
      %c0_26 = arith.constant 0 : index
      %c2_27 = arith.constant 2 : index
      %c0_28 = arith.constant 0 : index
      %49 = vector.load %arg4[%c0_26, %c2_27, %c0_28] : memref<1x4x128xf32, #tpu.memory_space<vmem>>, vector<1x1x128xf32>
      %50 = vector.shape_cast %49 : vector<1x1x128xf32> to vector<1x128xf32>
      %51 = vector.shape_cast %48 : vector<1x128xf32> to vector<1x1x128xf32>
      tpu.vector_store %arg4[%c0_26, %c2_27, %c0_28], %51 {strides = array<i32>} : memref<1x4x128xf32, #tpu.memory_space<vmem>>, vector<1x1x128xf32>,
      %c0_29 = arith.constant 0 : index
      %c3 = arith.constant 3 : index
      %c0_30 = arith.constant 0 : index
      %52 = vector.load %arg4[%c0_29, %c3, %c0_30] : memref<1x4x128xf32, #tpu.memory_space<vmem>>, vector<1x1x128xf32>
      %53 = vector.shape_cast %52 : vector<1x1x128xf32> to vector<1x128xf32>
      %cst_31 = arith.constant dense<0.000000e+00> : vector<128xf32>
      %54 = vector.multi_reduction <add>, %26, %cst_31 [0] : vector<16x128xf32> to vector<128xf32>
      %55 = vector.shape_cast %54 : vector<128xf32> to vector<1x128xf32>
      %56 = arith.addf %53, %55 : vector<1x128xf32>
      %c0_32 = arith.constant 0 : index
      %c3_33 = arith.constant 3 : index
      %c0_34 = arith.constant 0 : index
      %57 = vector.load %arg4[%c0_32, %c3_33, %c0_34] : memref<1x4x128xf32, #tpu.memory_space<vmem>>, vector<1x1x128xf32>
      %58 = vector.shape_cast %57 : vector<1x1x128xf32> to vector<1x128xf32>
      %59 = vector.shape_cast %56 : vector<1x128xf32> to vector<1x1x128xf32>
      tpu.vector_store %arg4[%c0_32, %c3_33, %c0_34], %59 {strides = array<i32>} : memref<1x4x128xf32, #tpu.memory_space<vmem>>, vector<1x1x128xf32>,
    } else {
    }
    return
  }
  func.func @transform_0(%arg0: i32, %arg1: i32) -> (i32, i32) {
    %c1_i32 = arith.constant 1 : i32
    %0 = arith.muli %arg0, %c1_i32 : i32
    %1 = arith.addi %0, %arg1 : i32
    %c0_i32 = arith.constant 0 : i32
    %2 = arith.minsi %1, %c0_i32 : i32
    %c0_i32_0 = arith.constant 0 : i32
    %c0_i32_1 = arith.constant 0 : i32
    return %2, %c0_i32_0 : i32, i32
  }
  func.func @transform_1(%arg0: i32, %arg1: i32) -> (i32, i32) {
    %c1_i32 = arith.constant 1 : i32
    %0 = arith.muli %arg0, %c1_i32 : i32
    %1 = arith.addi %0, %arg1 : i32
    %c0_i32 = arith.constant 0 : i32
    %2 = arith.minsi %1, %c0_i32 : i32
    %c0_i32_0 = arith.constant 0 : i32
    %c0_i32_1 = arith.constant 0 : i32
    return %2, %c0_i32_0 : i32, i32
  }
  func.func @transform_2(%arg0: i32, %arg1: i32) -> (i32, i32, i32) {
    %c0_i32 = arith.constant 0 : i32
    %c0_i32_0 = arith.constant 0 : i32
    %c0_i32_1 = arith.constant 0 : i32
    return %arg0, %c0_i32, %c0_i32_0 : i32, i32, i32
  }
}

</mosaic_0001>

<llo_original>
// kernel: tpu_custom_call.1
$region0: #{tpu_custom_call.1}
  #allocation0 [shape = 'u32[]', space=smem, size = 0x4, offset = 0x4, fixed_abs, tag = 'smem constant byte address 0x4 - core index']
  #allocation1 [shape = 'u32[144,128]{1,0:T(1,128)}', space=vmem, size = 0x12000, scoped, tag = 'internal scratch']
  %s0 = inlined_call_operand.hbm [shape: f32[16,128], index: 0, kind: input, shape index: {}]
  %s1 = inlined_call_operand.hbm [shape: f32[16,128], index: 1, kind: input, shape index: {}]
  %s2 = inlined_call_operand.hbm [shape: f32[2,4,128], index: 2, kind: output, shape index: {}]
  %s3 = sld [smem:[#allocation0]]
  $region57: #{tpu_custom_call.1} parent=0
    _
  %s5 = ssub.s32 1, %s3
  %s6 = scalar_select 0, %s5, %s3
  $region1: #{tpu_custom_call.1} parent=0
    #allocation2 [shape = 'u8[16384]{0}', space=vmem, size = 0x4000, scoped, tag = 'input window, operand 0']
    #allocation3 [shape = 's32[2]{0}', space=sflag, size = 0x8, scoped, tag = 'scoped memory for tpu_custom_call.1']
    #allocation4 [shape = 's32[2]{0}', space=sflag, size = 0x8, scoped, tag = 'scoped memory for tpu_custom_call.1']
    #allocation5 [shape = 'u8[16384]{0}', space=vmem, size = 0x4000, scoped, tag = 'input window, operand 1']
    #allocation6 [shape = 's32[2]{0}', space=sflag, size = 0x8, scoped, tag = 'scoped memory for tpu_custom_call.1']
    #allocation7 [shape = 'u8[4096]{0}', space=vmem, size = 0x1000, scoped, tag = 'output window, operand 0']
    %7 = vsyncpa [#allocation3], 0
    %s8 = scalar_lea.sflag [#allocation3], 1
    %9 = vsyncpa %s8, 0
    %10 = vsyncpa [#allocation6], 0
    %s11 = scalar_lea.sflag [#allocation6], 1
    %12 = vsyncpa %s11, 0
    %13 = vsyncpa [#allocation4], 0
    %s14 = scalar_lea.sflag [#allocation4], 1
    %15 = vsyncpa %s14, 0
    loop: start=0, step=1, limit=4
    $region2: #{tpu_custom_call.1} parent=1 // loop_pre_header
      _
    $region3: #{tpu_custom_call.1} parent=1 // loop_header
      %s17 = sphi 0, %s21
      %p18 = scmp.ge.s32.totalorder %s17, 4
      %s24 = sphi 0, %s36
      %s25 = sphi 0, %s32
      %s26 = sphi 0, %s24
      %s27 = sphi 0, %s25
      %s28 = sphi 0, %s26
      %s29 = sphi 0, %s27
      %s45 = sphi 0, %s47
      %s48 = sphi 0, %s45
      %s49 = sphi 0, %s48
      %s65 = sphi 0, %s49
      %s77 = sphi 0, %s79
      %s80 = sphi 0, %s77
      %s81 = sphi 0, %s80
      %s97 = sphi 0, %s81
      %s103 = sphi 0, %s105
      %s106 = sphi 0, %s103
      %s107 = sphi 0, %s106
      %s123 = sphi 0, %s107
    $region4: #{tpu_custom_call.1} parent=1 // loop_header_branch
      %20 = sbr.rel (%p18) target = $region8
    $region5: #{tpu_custom_call.1} parent=1 // loop_body
      %s22 = ssub.s32 %s17, 1
      %s23 = ssub.s32 %s17, 2
      %s30 = sadd.s32 1, %s25
      %p31 = scmp.ge.s32.totalorder %s30, 1
      %s32 = scalar_select %p31, 0, %s30
      %s33 = sadd.s32 1, %s24
      %s34 = scalar_select %p31, %s33, %s24
      %p35 = scmp.ge.s32.totalorder %s34, 2
      %s36 = scalar_select %p35, 0, %s34
      %s37 = sadd.s32 %s24, %s25
      %p38 = scmp.lt.s32.totalorder %s37, 0
      %s39 = scalar_select %p38, %s37, 0
      %s40 = sadd.s32 %s36, %s32
      %p41 = scmp.lt.s32.totalorder %s40, 0
      %s42 = scalar_select %p41, %s40, 0
      %s43 = ssub.s32 %s39, %s42
      %p44 = scmp.eq.s32.totalorder %s43, 0
      %s46 = sadd.s32 %s45, 1
      %s47 = scalar_select %p44, %s45, %s46
      %p50 = pneg %p44
      %p51 = scmp.eq.s32.totalorder %s17, 1
      %p52 = por %p50, %p51
      %p53 = scmp.ne.s32.totalorder %s45, %s48
      %p54 = scmp.eq.s32.totalorder %s17, 0
      %p55 = por %p53, %p54
      %p56 = scmp.ne.s32.totalorder %s45, %s48
      %p57 = scmp.eq.s32.totalorder %s22, 1
      %p58 = por %p56, %p57
      %p59 = scmp.ne.s32.totalorder %s48, %s49
      %p60 = scmp.eq.s32.totalorder %s22, 0
      %p61 = por %p59, %p60
      %p62 = scmp.ne.s32.totalorder %s48, %s49
      %p63 = scmp.eq.s32.totalorder %s23, 1
      %p64 = por %p62, %p63
      %p66 = scmp.ne.s32.totalorder %s49, %s65
      %p67 = scmp.eq.s32.totalorder %s23, 0
      %p68 = por %p66, %p67
      %s69 = sadd.s32 %s24, %s25
      %p70 = scmp.lt.s32.totalorder %s69, 0
      %s71 = scalar_select %p70, %s69, 0
      %s72 = sadd.s32 %s36, %s32
      %p73 = scmp.lt.s32.totalorder %s72, 0
      %s74 = scalar_select %p73, %s72, 0
      %s75 = ssub.s32 %s71, %s74
      %p76 = scmp.eq.s32.totalorder %s75, 0
      %s78 = sadd.s32 %s77, 1
      %s79 = scalar_select %p76, %s77, %s78
      %p82 = pneg %p76
      %p83 = scmp.eq.s32.totalorder %s17, 1
      %p84 = por %p82, %p83
      %p85 = scmp.ne.s32.totalorder %s77, %s80
      %p86 = scmp.eq.s32.totalorder %s17, 0
      %p87 = por %p85, %p86
      %p88 = scmp.ne.s32.totalorder %s77, %s80
      %p89 = scmp.eq.s32.totalorder %s22, 1
      %p90 = por %p88, %p89
      %p91 = scmp.ne.s32.totalorder %s80, %s81
      %p92 = scmp.eq.s32.totalorder %s22, 0
      %p93 = por %p91, %p92
      %p94 = scmp.ne.s32.totalorder %s80, %s81
      %p95 = scmp.eq.s32.totalorder %s23, 1
      %p96 = por %p94, %p95
      %p98 = scmp.ne.s32.totalorder %s81, %s97
      %p99 = scmp.eq.s32.totalorder %s23, 0
      %p100 = por %p98, %p99
      %s101 = ssub.s32 %s24, %s36
      %p102 = scmp.eq.s32.totalorder %s101, 0
      %s104 = sadd.s32 %s103, 1
      %s105 = scalar_select %p102, %s103, %s104
      %p108 = pneg %p102
      %p109 = scmp.eq.s32.totalorder %s17, 1
      %p110 = por %p108, %p109
      %p111 = scmp.ne.s32.totalorder %s103, %s106
      %p112 = scmp.eq.s32.totalorder %s17, 0
      %p113 = por %p111, %p112
      %p114 = scmp.ne.s32.totalorder %s103, %s106
      %p115 = scmp.eq.s32.totalorder %s22, 1
      %p116 = por %p114, %p115
      %p117 = scmp.ne.s32.totalorder %s106, %s107
      %p118 = scmp.eq.s32.totalorder %s22, 0
      %p119 = por %p117, %p118
      %p120 = scmp.ne.s32.totalorder %s106, %s107
      %p121 = scmp.eq.s32.totalorder %s23, 1
      %p122 = por %p120, %p121
      %p124 = scmp.ne.s32.totalorder %s107, %s123
      %p125 = scmp.eq.s32.totalorder %s23, 0
      %p126 = por %p124, %p125
      %p127 = scmp.le.s32.totalorder 1, %s17
      %p128 = scmp.lt.s32.totalorder %s17, 3
      %p129 = pnand %p127, %p128
      %p130 = pneg %p129
      // Predicated region
      $region9: #{tpu_custom_call.1} parent=5 // pred_check
        _
      $region10: #{tpu_custom_call.1} parent=5 // pred_check_branch
        %132 = sbr.rel (%p129) target = $region12
      $region11: #{tpu_custom_call.1} parent=5 // pred_region
        %s133 = ssub.s32 %s17, 1
      $region12: #{tpu_custom_call.1} parent=5 // pred_fallthru
        _
      %p134 = scmp.lt.s32.totalorder %s17, 2
      // Predicated region
      $region13: #{tpu_custom_call.1} parent=5 // pred_check
        %p135 = pneg %p134
      $region14: #{tpu_custom_call.1} parent=5 // pred_check_branch
        %137 = sbr.rel (%p135) target = $region16
      $region15: #{tpu_custom_call.1} parent=5 // pred_region
        // Predicated region
        $region17: #{tpu_custom_call.1} parent=15 // pred_check
          %p138 = pneg %p55
        $region18: #{tpu_custom_call.1} parent=15 // pred_check_branch
          %140 = sbr.rel (%p138) target = $region20
        $region19: #{tpu_custom_call.1} parent=15 // pred_region
          %s141 = sand.u32 %s45, 1
          %s142 = scalar_lea.sflag [#allocation3], %s141
          %s143 = sand.u32 %s45, 1
          %s144 = smul.addr %s143, 16
          %s145 = scalar_lea.vmem [#allocation2], %s144
          %s146 = sadd.s32 %s24, %s25
          %p147 = scmp.lt.s32.totalorder %s146, 0
          %s148 = scalar_select %p147, %s146, 0
          %s149 = smul.u32 2, %s148
          %s151 = ssub.s32 256, 256
          %152 = vsyncadd %s142, %s151
          %s153 = smul.addr %s149, 128
          %s154 = scalar_lea.hbm %s0, %s153
          %s155 = sshll.u32 %s145, 4
          %s156 = int_to_ptr.vmem [resolvable:$true] %s155
          %161 = dma.hbm_to_vmem [thread:$0]  %s154, 256, %s156, %s142, 128, 128, 8
        $region20: #{tpu_custom_call.1} parent=15 // pred_fallthru
          _
        // Predicated region
        $region21: #{tpu_custom_call.1} parent=15 // pred_check
          %p162 = pneg %p87
        $region22: #{tpu_custom_call.1} parent=15 // pred_check_branch
          %164 = sbr.rel (%p162) target = $region24
        $region23: #{tpu_custom_call.1} parent=15 // pred_region
          %s165 = sand.u32 %s77, 1
          %s166 = scalar_lea.sflag [#allocation6], %s165
          %s167 = sand.u32 %s77, 1
          %s168 = smul.addr %s167, 16
          %s169 = scalar_lea.vmem [#allocation5], %s168
          %s170 = sadd.s32 %s24, %s25
          %p171 = scmp.lt.s32.totalorder %s170, 0
          %s172 = scalar_select %p171, %s170, 0
          %s173 = smul.u32 2, %s172
          %s175 = ssub.s32 256, 256
          %176 = vsyncadd %s166, %s175
          %s177 = smul.addr %s173, 128
          %s178 = scalar_lea.hbm %s1, %s177
          %s179 = sshll.u32 %s169, 4
          %s180 = int_to_ptr.vmem [resolvable:$true] %s179
          %185 = dma.hbm_to_vmem [thread:$0]  %s178, 256, %s180, %s166, 128, 128, 8
        $region24: #{tpu_custom_call.1} parent=15 // pred_fallthru
          _
      $region16: #{tpu_custom_call.1} parent=5 // pred_fallthru
        _
      %p186 = scmp.le.s32.totalorder 1, %s17
      %p187 = scmp.lt.s32.totalorder %s17, 3
      %p188 = pnand %p186, %p187
      %p189 = pneg %p188
      // Predicated region
      $region25: #{tpu_custom_call.1} parent=5 // pred_check
        _
      $region26: #{tpu_custom_call.1} parent=5 // pred_check_branch
        %191 = sbr.rel (%p188) target = $region28
      $region27: #{tpu_custom_call.1} parent=5 // pred_region
        %s192 = ssub.s32 %s17, 1
        %s193 = sand.u32 %s48, 1
        %s194 = scalar_lea.sflag [#allocation3], %s193
        %s195 = sand.u32 %s48, 1
        %s196 = smul.addr %s195, 16
        %s197 = scalar_lea.vmem [#allocation2], %s196
        // Predicated region
        $region29: #{tpu_custom_call.1} parent=27 // pred_check
          %p198 = pneg %p61
        $region30: #{tpu_custom_call.1} parent=27 // pred_check_branch
          %200 = sbr.rel (%p198) target = $region32
        $region31: #{tpu_custom_call.1} parent=27 // pred_region
          %201 = dma.done %s194, 256
        $region32: #{tpu_custom_call.1} parent=27 // pred_fallthru
          _
        %s202 = sand.u32 %s80, 1
        %s203 = scalar_lea.sflag [#allocation6], %s202
        %s204 = sand.u32 %s80, 1
        %s205 = smul.addr %s204, 16
        %s206 = scalar_lea.vmem [#allocation5], %s205
        // Predicated region
        $region33: #{tpu_custom_call.1} parent=27 // pred_check
          %p207 = pneg %p93
        $region34: #{tpu_custom_call.1} parent=27 // pred_check_branch
          %209 = sbr.rel (%p207) target = $region36
        $region35: #{tpu_custom_call.1} parent=27 // pred_region
          %210 = dma.done %s203, 256
        $region36: #{tpu_custom_call.1} parent=27 // pred_fallthru
          _
        %s211 = sand.u32 %s48, 1
        %s212 = scalar_lea.sflag [#allocation3], %s211
        %s213 = sand.u32 %s48, 1
        %s214 = smul.addr %s213, 16
        %s215 = scalar_lea.vmem [#allocation2], %s214
        %p216 = pneg %p61
        %p217 = pneg %p58
        %s218 = sand.u32 %s80, 1
        %s219 = scalar_lea.sflag [#allocation6], %s218
        %s220 = sand.u32 %s80, 1
        %s221 = smul.addr %s220, 16
        %s222 = scalar_lea.vmem [#allocation5], %s221
        %p223 = pneg %p93
        %p224 = pneg %p90
        %p225 = pneg %p119
        %p226 = pneg %p116
        %s227 = sand.u32 %s106, 1
        %s228 = scalar_lea.sflag [#allocation4], %s227
        %s229 = sand.u32 %s106, 1
        %s230 = smul.addr %s229, 4
        %s231 = scalar_lea.vmem [#allocation7], %s230
        %s232 = sadd.s32 %s26, %s27
        %p233 = scmp.lt.s32.totalorder %s232, 0
        %s234 = scalar_select %p233, %s232, 0
        %s235 = smul.u32 2, %s234
        %s236 = sadd.s32 %s26, %s27
        %p237 = scmp.lt.s32.totalorder %s236, 0
        %s238 = scalar_select %p237, %s236, 0
        %s239 = smul.u32 2, %s238
        %p240 = scmp.eq.s32.totalorder %s27, 0
        // Predicated region
        $region37: #{tpu_custom_call.1} parent=27 // pred_check
          %p241 = pneg %p240
        $region38: #{tpu_custom_call.1} parent=27 // pred_check_branch
          %243 = sbr.rel (%p241) target = $region40
        $region39: #{tpu_custom_call.1} parent=27 // pred_region
          %244 = vst [vmem:[%s231] sm:$0xf] 0.0
        $region40: #{tpu_custom_call.1} parent=27 // pred_fallthru
          _
        %s245 = sadd.s32 %s26, %s27
        %p246 = scmp.lt.s32.totalorder %s245, 1
        // Predicated region
        $region41: #{tpu_custom_call.1} parent=27 // pred_check
          %p247 = pneg %p246
        $region42: #{tpu_custom_call.1} parent=27 // pred_check_branch
          %249 = sbr.rel (%p247) target = $region44
        $region43: #{tpu_custom_call.1} parent=27 // pred_region
          %v250 = vld [vmem:[%s197] sm:$0xff]
          %v251 = vld [vmem:[%s197 + $0x8] sm:$0xff]
          %v252 = vld [vmem:[%s206] sm:$0xff]
          %v253 = vld [vmem:[%s206 + $0x8] sm:$0xff]
          %v254 = vand.u32 2147483647, %v250
          %v255 = vand.u32 2147483647, %v251
          %v256 = vsub.f32 0.0, %v254
          %v257 = vsub.f32 0.0, %v255
          %v258 = vmul.f32 %v256, 1.442695
          %v259 = vpow.pop %v258
          %v260 = vmul.f32 %v257, 1.442695
          %v261 = vpow.pop %v260
          %v262 = vadd.f32 %v259, 1.0
          %v263 = vadd.f32 %v261, 1.0
          %vm264 = vcmp.ge.f32.partialorder %v250, 0.0
          %vm265 = vcmp.ge.f32.partialorder %v251, 0.0
          %v266 = vsel %vm264, 1.0, %v259
          %v267 = vsel %vm265, 1.0, %v261
          %v268 = vrcp.pop %v262
          %v269 = vmul.f32 %v266, %v268
          %v270 = vrcp.pop %v263
          %v271 = vmul.f32 %v267, %v270
          %v272 = vmax.f32 %v250, 0.0
          %v273 = vmax.f32 %v251, 0.0
          %v274 = vmul.f32 %v250, %v252
          %v275 = vmul.f32 %v251, %v253
          %v276 = vsub.f32 %v272, %v274
          %v277 = vsub.f32 %v273, %v275
          %v278 = vadd.f32 %v259, 1.0
          %v279 = vlog2.pop %v278
          %v280 = vmul.f32 %v279, 0.6931472
          %v281 = vmul.f32 -0.5, %v259
          %v282 = vadd.f32 %v281, 1.0
          %v283 = vmul.f32 %v282, %v259
          %v284 = vand.u32 2147483647, %v259
          %vm285 = vcmp.lt.f32.partialorder %v284, 0.0004427343
          %v286 = vsel %vm285, %v283, %v280
          %v287 = vadd.f32 %v261, 1.0
          %v288 = vlog2.pop %v287
          %v289 = vmul.f32 %v288, 0.6931472
          %v290 = vmul.f32 -0.5, %v261
          %v291 = vadd.f32 %v290, 1.0
          %v292 = vmul.f32 %v291, %v261
          %v293 = vand.u32 2147483647, %v261
          %vm294 = vcmp.lt.f32.partialorder %v293, 0.0004427343
          %v295 = vsel %vm294, %v292, %v289
          %v296 = vadd.f32 %v276, %v286
          %v297 = vadd.f32 %v277, %v295
          %v298 = vld [vmem:[%s231] sm:$0x1]
          %v299 = vmul.f32 %v269, %v252
          %v300 = vmul.f32 %v271, %v253
          %v301 = vadd.f32 %v299, %v300
          %v302 = vrot.slane %v301, 4
          %v303 = vadd.f32 %v301, %v302
          %v304 = vrot.slane %v303, 2
          %v305 = vadd.f32 %v303, %v304
          %v306 = vrot.slane %v305, 1
          %v307 = vadd.f32 %v305, %v306
          %v308 = vadd.f32 %v298, %v307
          %309 = vst [vmem:[%s231] sm:$0x1] %v308
          %v310 = vld [vmem:[%s231 + $0x1] sm:$0x1]
          %v311 = vadd.f32 %v269, %v271
          %v312 = vrot.slane %v311, 4
          %v313 = vadd.f32 %v311, %v312
          %v314 = vrot.slane %v313, 2
          %v315 = vadd.f32 %v313, %v314
          %v316 = vrot.slane %v315, 1
          %v317 = vadd.f32 %v315, %v316
          %v318 = vadd.f32 %v310, %v317
          %319 = vst [vmem:[%s231 + $0x1] sm:$0x1] %v318
          %v320 = vld [vmem:[%s231 + $0x2] sm:$0x1]
          %v321 = vadd.f32 %v252, %v253
          %v322 = vrot.slane %v321, 4
          %v323 = vadd.f32 %v321, %v322
          %v324 = vrot.slane %v323, 2
          %v325 = vadd.f32 %v323, %v324
          %v326 = vrot.slane %v325, 1
          %v327 = vadd.f32 %v325, %v326
          %v328 = vadd.f32 %v320, %v327
          %329 = vst [vmem:[%s231 + $0x2] sm:$0x1] %v328
          %v330 = vld [vmem:[%s231 + $0x3] sm:$0x1]
          %v331 = vadd.f32 %v296, %v297
          %v332 = vrot.slane %v331, 4
          %v333 = vadd.f32 %v331, %v332
          %v334 = vrot.slane %v333, 2
          %v335 = vadd.f32 %v333, %v334
          %v336 = vrot.slane %v335, 1
          %v337 = vadd.f32 %v335, %v336
          %v338 = vadd.f32 %v330, %v337
          %339 = vst [vmem:[%s231 + $0x3] sm:$0x1] %v338
        $region44: #{tpu_custom_call.1} parent=27 // pred_fallthru
          _
        %s340 = sand.u32 %s106, 1
        %s341 = scalar_lea.sflag [#allocation4], %s340
        %s342 = sand.u32 %s106, 1
        %s343 = smul.addr %s342, 4
        %s344 = scalar_lea.vmem [#allocation7], %s343
        // Predicated region
        $region45: #{tpu_custom_call.1} parent=27 // pred_check
          %p345 = pneg %p116
        $region46: #{tpu_custom_call.1} parent=27 // pred_check_branch
          %347 = sbr.rel (%p345) target = $region48
        $region47: #{tpu_custom_call.1} parent=27 // pred_region
          %s349 = ssub.s32 64, 64
          %350 = vsyncadd %s341, %s349
          %s351 = smul.addr %s26, 64
          %s352 = scalar_lea.hbm %s2, %s351
          %s354 = sshll.u32 %s344, 4
          %s355 = int_to_ptr.vmem [resolvable:$true] %s354
          %357 = dma.vmem_to_hbm [thread:$0]  %s355, 64, %s352, %s341
        $region48: #{tpu_custom_call.1} parent=27 // pred_fallthru
          _
      $region28: #{tpu_custom_call.1} parent=5 // pred_fallthru
        _
      %p358 = scmp.le.s32.totalorder 2, %s17
      // Predicated region
      $region49: #{tpu_custom_call.1} parent=5 // pred_check
        %p359 = pneg %p358
      $region50: #{tpu_custom_call.1} parent=5 // pred_check_branch
        %361 = sbr.rel (%p359) target = $region52
      $region51: #{tpu_custom_call.1} parent=5 // pred_region
        %s362 = ssub.s32 %s17, 2
        // Predicated region
        $region53: #{tpu_custom_call.1} parent=51 // pred_check
          %p363 = pneg %p122
        $region54: #{tpu_custom_call.1} parent=51 // pred_check_branch
          %365 = sbr.rel (%p363) target = $region56
        $region55: #{tpu_custom_call.1} parent=51 // pred_region
          %s366 = sand.u32 %s107, 1
          %s367 = scalar_lea.sflag [#allocation4], %s366
          %s368 = sand.u32 %s107, 1
          %s369 = smul.addr %s368, 4
          %s370 = scalar_lea.vmem [#allocation7], %s369
          %371 = dma.done %s367, 64
        $region56: #{tpu_custom_call.1} parent=51 // pred_fallthru
          _
      $region52: #{tpu_custom_call.1} parent=5 // pred_fallthru
        _
    $region6: #{tpu_custom_call.1} parent=1 // loop_footer
      %s21 = sadd.s32 1, %s17
    $region7: #{tpu_custom_call.1} parent=1 // loop_footer_branch
      %16 = sbr.rel target = $region3
    $region8: #{tpu_custom_call.1} parent=1 // loop_exit
      _
    %372 = vsyncpa [#allocation3], 1
    %s373 = scalar_lea.sflag [#allocation3], 1
    %374 = vsyncpa %s373, 1
    %375 = vsyncpa [#allocation6], 1
    %s376 = scalar_lea.sflag [#allocation6], 1
    %377 = vsyncpa %s376, 1
    %378 = vsyncpa [#allocation4], 1
    %s379 = scalar_lea.sflag [#allocation4], 1
    %380 = vsyncpa %s379, 1

</llo_original>
